<compile_context>
chip_gen: v5e
topology: v5e:2x2
jax: 0.10.0
libtpu: 0.0.40
codegen_flags: <defaults>
</compile_context>

<pallas_src>
import functools
import math

import jax
import jax.numpy as jnp
from jax.experimental import pallas as pl
from jax.experimental.pallas import tpu as pltpu


def _critic_kernel(obs_ref, act_ref, w1o_ref, w1a_ref, b1_ref,
                   w2_ref, b2_ref, w3_ref, b3_ref, out_ref, *, matmul_dtype):
    """One batch tile, transposed orientation (batch on lanes).

    MXU: two hidden matmuls + the final 1-row matmul (f32 accumulation).
    VPU: bias-add / ReLU in f32 on [H, TB] tiles (full lane utilization).
    Output is a lane-dense [1, TB] row.
    """
    obs = obs_ref[...].astype(matmul_dtype)            # [TB, obs_dim]
    act = act_ref[...].astype(matmul_dtype)            # [TB, act_dim]

    def mm_nt(w_ref, x):                               # [O,K] @ [TB,K]^T -> [O,TB]
        return jax.lax.dot_general(
            w_ref[...], x, (((1,), (1,)), ((), ())),
            preferred_element_type=jnp.float32)

    def mm_nn(w_ref, h):                               # [O,K] @ [K,TB]   -> [O,TB]
        return jnp.dot(w_ref[...], h.astype(matmul_dtype),
                       preferred_element_type=jnp.float32)

    # layer 1 -- concat fused as a split (NT) matmul: [W1o^T | W1a^T] @ [obs ; act]^T
    h1 = mm_nt(w1o_ref, obs) + mm_nt(w1a_ref, act) + b1_ref[...]    # [H1, TB] f32
    h1 = jnp.maximum(h1, 0.0)

    # layer 2
    h2 = jnp.maximum(mm_nn(w2_ref, h1) + b2_ref[...], 0.0)          # [H2, TB] f32

    # final Linear(H2 -> 1): lane-dense row result
    q = mm_nn(w3_ref, h2) + b3_ref[0, 0]                            # [1, TB]  f32
    out_ref[...] = q.reshape(out_ref.shape).astype(out_ref.dtype)


def _round_up(x, m):
    return ((x + m - 1) // m) * m


def critic_forward(obs, actions, params, *, tile_b=4096,
                   matmul_dtype=jnp.bfloat16, core_parallel=False):
    """Q(s, a).  obs: [B, *obs_shape], actions: [B, action_dim] -> [B, 1]."""
    obs = jnp.asarray(obs, jnp.float32)
    actions = jnp.asarray(actions, jnp.float32)
    B = obs.shape[0]
    obs = obs.reshape(B, -1)                            # flatten any obs_shape
    actions = actions.reshape(B, -1)
    obs_dim = obs.shape[1]
    act_dim = actions.shape[1]

    w1, b1, w2, b2, w3, b3 = params
    h1_dim = w1.shape[1]
    h2_dim = w2.shape[1]

    # Resident weights: transposed orientation, pre-cast once to matmul_dtype.
    w1o_t = jnp.asarray(w1[:obs_dim].T, matmul_dtype)   # [H1, obs_dim]
    w1a_t = jnp.asarray(w1[obs_dim:].T, matmul_dtype)   # [H1, act_dim]
    w2_t = jnp.asarray(w2.T, matmul_dtype)              # [H2, H1]
    w3_t = jnp.asarray(w3.T, matmul_dtype)              # [1,  H2]
    b1_c = jnp.asarray(b1, jnp.float32).reshape(h1_dim, 1)
    b2_c = jnp.asarray(b2, jnp.float32).reshape(h2_dim, 1)
    b3_s = jnp.asarray(b3, jnp.float32).reshape(1, 1)   # SMEM scalar

    # Batch tile: multiple of 8 sublanes, capped near B.  No wrapper padding:
    # the grid uses cdiv and Pallas handles the partial last block.
    tb = max(8, min(_round_up(tile_b, 8), _round_up(B, 8)))
    num_tiles = pl.cdiv(B, tb)

    const2 = lambda i: (0, 0)
    resident = lambda a: pl.BlockSpec(a.shape, const2)  # VMEM-resident across steps

    kernel = functools.partial(_critic_kernel, matmul_dtype=matmul_dtype)

    in_dim = obs_dim + act_dim
    cost = pl.CostEstimate(
        flops=2 * B * (in_dim * h1_dim + h1_dim * h2_dim + h2_dim),
        transcendentals=0,
        bytes_accessed=4 * (B * (in_dim + 1)
                            + in_dim * h1_dim + h1_dim * h2_dim + h2_dim
                            + h1_dim + h2_dim + 1),
    )

    # pltpu.CORE_PARALLEL gives a real 2-TensorCore split of the batch grid on v7x.
    sem = (pltpu.CORE_PARALLEL,) if core_parallel else ("parallel",)

    out = pl.pallas_call(
        kernel,
        out_shape=jax.ShapeDtypeStruct((num_tiles, 1, tb), jnp.float32),
        grid=(num_tiles,),
        in_specs=[
            pl.BlockSpec((tb, obs_dim), lambda i: (i, 0)),          # obs tile
            pl.BlockSpec((tb, act_dim), lambda i: (i, 0)),          # action tile
            resident(w1o_t), resident(w1a_t), resident(b1_c),
            resident(w2_t), resident(b2_c),
            resident(w3_t),
            pl.BlockSpec((1, 1), const2,
                         memory_space=pltpu.MemorySpace.SMEM),      # b3 scalar
        ],
        out_specs=pl.BlockSpec((1, 1, tb), lambda i: (i, 0, 0)),    # lane-dense row
        compiler_params=pltpu.CompilerParams(
            dimension_semantics=sem,
            vmem_limit_bytes=32 * 1024 * 1024),   # safe on all gens; lifts v5e default
        cost_estimate=cost,
    )(obs, actions, w1o_t, w1a_t, b1_c, w2_t, b2_c, w3_t, b3_s)

    return out.reshape(num_tiles * tb, 1)[:B]


def init_params(key, input_dim, hidden_dims):
    """PyTorch-Linear-style uniform(-1/sqrt(fan_in), +) init; weights stored [in, out]."""
    dims = [input_dim] + list(hidden_dims) + [1]
    params = []
    for i in range(len(dims) - 1):
        fan_in, fan_out = dims[i], dims[i + 1]
        key, kw, kb = jax.random.split(key, 3)
        bound = 1.0 / math.sqrt(fan_in)
        w = jax.random.uniform(kw, (fan_in, fan_out), jnp.float32, -bound, bound)
        b = jax.random.uniform(kb, (1, fan_out), jnp.float32, -bound, bound)
        params += [w, b]
    return tuple(params)


def critic_reference(obs, actions, params):
    """Pure-JAX f32 reference of the same forward (matches the PyTorch module)."""
    w1, b1, w2, b2, w3, b3 = params
    obs = jnp.asarray(obs, jnp.float32).reshape(obs.shape[0], -1)
    actions = jnp.asarray(actions, jnp.float32).reshape(actions.shape[0], -1)
    x = jnp.concatenate([obs, actions], axis=1)
    h = jnp.maximum(x @ w1 + b1, 0.0)
    h = jnp.maximum(h @ w2 + b2, 0.0)
    return h @ w3 + b3


if __name__ == "__main__":
    key = jax.random.PRNGKey(0)

    B = 8
    obs_shape = (16,)
    action_dim = 8
    hidden_dims = (32, 32)
    input_dim = int(math.prod(obs_shape)) + action_dim

    key, k_obs, k_act, k_par = jax.random.split(key, 4)
    obs = jax.random.normal(k_obs, (B,) + obs_shape, jnp.float32)
    actions = jax.random.normal(k_act, (B, action_dim), jnp.float32)
    params = init_params(k_par, input_dim, hidden_dims)

    q_ref = critic_reference(obs, actions, params)

    # f32 MXU-input path (eval-parity path)
    q_f32 = jax.block_until_ready(
        critic_forward(obs, actions, params, matmul_dtype=jnp.float32))
    assert q_f32.shape == (B, 1)
    assert jnp.allclose(q_f32, q_ref, atol=1e-3, rtol=1e-3)

    # fast path: bf16 MXU inputs, f32 accumulation -- looser tolerance
    q_bf16 = jax.block_until_ready(critic_forward(obs, actions, params))
    assert q_bf16.shape == (B, 1)
    assert jnp.allclose(q_bf16, q_ref, atol=5e-2, rtol=5e-2)

    # multi-tile grid with a non-divisible batch (exercises the partial last block,
    # no wrapper padding copy)
    B2 = 50
    k_obs2, k_act2 = jax.random.split(key, 2)
    obs2 = jax.random.normal(k_obs2, (B2,) + obs_shape, jnp.float32)
    act2 = jax.random.normal(k_act2, (B2, action_dim), jnp.float32)
    q2 = jax.block_until_ready(
        critic_forward(obs2, act2, params, tile_b=16, matmul_dtype=jnp.float32))
    assert q2.shape == (B2, 1)
    assert jnp.allclose(q2, critic_reference(obs2, act2, params),
                        atol=1e-3, rtol=1e-3)

    print("KERNEL_OK")
</pallas_src>

<mosaic_0001>
module attributes {stable_mosaic.version = 11 : i64} {
  func.func @_critic_kernel(%arg0: i32, %arg1: memref<8x16xf32, #tpu.memory_space<vmem>>, %arg2: memref<8x8xf32, #tpu.memory_space<vmem>>, %arg3: memref<32x16xf32, #tpu.memory_space<vmem>>, %arg4: memref<32x8xf32, #tpu.memory_space<vmem>>, %arg5: memref<32x1xf32, #tpu.memory_space<vmem>>, %arg6: memref<32x32xf32, #tpu.memory_space<vmem>>, %arg7: memref<32x1xf32, #tpu.memory_space<vmem>>, %arg8: memref<1x32xf32, #tpu.memory_space<vmem>>, %arg9: memref<1x1xf32, #tpu.memory_space<smem>>, %arg10: memref<1x1x8xf32, #tpu.memory_space<vmem>>) attributes {dimension_semantics = [#tpu.dimension_semantics<parallel>], iteration_bounds = array<i64: 1>, scalar_prefetch = 0 : i64, scratch_operands = 0 : i64, tpu.core_type = #tpu.core_type<tc>, window_params = [{transform_indices = @transform_0, window_bounds = array<i64: 8, 16>}, {transform_indices = @transform_1, window_bounds = array<i64: 8, 8>}, {pipeline_mode = #tpu.pipeline_mode<synchronous>, transform_indices = @transform_2, window_bounds = array<i64: 32, 16>}, {pipeline_mode = #tpu.pipeline_mode<synchronous>, transform_indices = @transform_3, window_bounds = array<i64: 32, 8>}, {pipeline_mode = #tpu.pipeline_mode<synchronous>, transform_indices = @transform_4, window_bounds = array<i64: 32, 1>}, {pipeline_mode = #tpu.pipeline_mode<synchronous>, transform_indices = @transform_5, window_bounds = array<i64: 32, 32>}, {pipeline_mode = #tpu.pipeline_mode<synchronous>, transform_indices = @transform_6, window_bounds = array<i64: 32, 1>}, {pipeline_mode = #tpu.pipeline_mode<synchronous>, transform_indices = @transform_7, window_bounds = array<i64: 1, 32>}, {transform_indices = @transform_8, window_bounds = array<i64: 1, 1>}, {transform_indices = @transform_9, window_bounds = array<i64: 1, 1, 8>}]} {
    %c0 = arith.constant 0 : index
    %c0_0 = arith.constant 0 : index
    %0 = vector.load %arg1[%c0, %c0_0] : memref<8x16xf32, #tpu.memory_space<vmem>>, vector<8x16xf32>
    %c0_1 = arith.constant 0 : index
    %c0_2 = arith.constant 0 : index
    %1 = vector.load %arg2[%c0_1, %c0_2] : memref<8x8xf32, #tpu.memory_space<vmem>>, vector<8x8xf32>
    %c0_3 = arith.constant 0 : index
    %c0_4 = arith.constant 0 : index
    %2 = vector.load %arg3[%c0_3, %c0_4] : memref<32x16xf32, #tpu.memory_space<vmem>>, vector<32x16xf32>
    %cst = arith.constant dense<0.000000e+00> : vector<32x8xf32>
    %3 = tpu.matmul %2, %0, %cst {dimension_numbers = #tpu.dot_dimension_numbers<[1], [1], [0], [0], [0, 0, 1, 0], [], []>} : vector<32x16xf32>, vector<8x16xf32>, vector<32x8xf32> -> vector<32x8xf32>
    %c0_5 = arith.constant 0 : index
    %c0_6 = arith.constant 0 : index
    %4 = vector.load %arg4[%c0_5, %c0_6] : memref<32x8xf32, #tpu.memory_space<vmem>>, vector<32x8xf32>
    %cst_7 = arith.constant dense<0.000000e+00> : vector<32x8xf32>
    %5 = tpu.matmul %4, %1, %cst_7 {dimension_numbers = #tpu.dot_dimension_numbers<[1], [1], [0], [0], [0, 0, 1, 0], [], []>} : vector<32x8xf32>, vector<8x8xf32>, vector<32x8xf32> -> vector<32x8xf32>
    %6 = arith.addf %3, %5 : vector<32x8xf32>
    %c0_8 = arith.constant 0 : index
    %c0_9 = arith.constant 0 : index
    %7 = vector.load %arg5[%c0_8, %c0_9] : memref<32x1xf32, #tpu.memory_space<vmem>>, vector<32x1xf32>
    %8 = vector.broadcast %7 : vector<32x1xf32> to vector<32x8xf32>
    %9 = arith.addf %6, %8 : vector<32x8xf32>
    %cst_10 = arith.constant 0.000000e+00 : f32
    %10 = vector.broadcast %cst_10 : f32 to vector<32x8xf32>
    %11 = arith.maximumf %9, %10 : vector<32x8xf32>
    %c0_11 = arith.constant 0 : index
    %c0_12 = arith.constant 0 : index
    %12 = vector.load %arg6[%c0_11, %c0_12] : memref<32x32xf32, #tpu.memory_space<vmem>>, vector<32x32xf32>
    %cst_13 = arith.constant dense<0.000000e+00> : vector<32x8xf32>
    %13 = tpu.matmul %12, %11, %cst_13 {dimension_numbers = #tpu.dot_dimension_numbers<[1], [0], [0], [1], [0, 0, 1, 1], [], []>} : vector<32x32xf32>, vector<32x8xf32>, vector<32x8xf32> -> vector<32x8xf32>
    %c0_14 = arith.constant 0 : index
    %c0_15 = arith.constant 0 : index
    %14 = vector.load %arg7[%c0_14, %c0_15] : memref<32x1xf32, #tpu.memory_space<vmem>>, vector<32x1xf32>
    %15 = vector.broadcast %14 : vector<32x1xf32> to vector<32x8xf32>
    %16 = arith.addf %13, %15 : vector<32x8xf32>
    %cst_16 = arith.constant 0.000000e+00 : f32
    %17 = vector.broadcast %cst_16 : f32 to vector<32x8xf32>
    %18 = arith.maximumf %16, %17 : vector<32x8xf32>
    %c0_17 = arith.constant 0 : index
    %c0_18 = arith.constant 0 : index
    %19 = vector.load %arg8[%c0_17, %c0_18] : memref<1x32xf32, #tpu.memory_space<vmem>>, vector<1x32xf32>
    %cst_19 = arith.constant dense<0.000000e+00> : vector<1x8xf32>
    %20 = tpu.matmul %19, %18, %cst_19 {dimension_numbers = #tpu.dot_dimension_numbers<[1], [0], [0], [1], [0, 0, 1, 1], [], []>} : vector<1x32xf32>, vector<32x8xf32>, vector<1x8xf32> -> vector<1x8xf32>
    %c0_20 = arith.constant 0 : index
    %c0_21 = arith.constant 0 : index
    %21 = memref.load %arg9[%c0_20, %c0_21] : memref<1x1xf32, #tpu.memory_space<smem>>
    %22 = vector.broadcast %21 : f32 to vector<1x8xf32>
    %23 = arith.addf %20, %22 : vector<1x8xf32>
    %24 = vector.shape_cast %23 : vector<1x8xf32> to vector<1x1x8xf32>
    %c0_22 = arith.constant 0 : index
    %c0_23 = arith.constant 0 : index
    %c0_24 = arith.constant 0 : index
    %25 = vector.load %arg10[%c0_22, %c0_23, %c0_24] : memref<1x1x8xf32, #tpu.memory_space<vmem>>, vector<1x1x8xf32>
    tpu.vector_store %arg10[%c0_22, %c0_23, %c0_24], %24 {strides = array<i32>} : memref<1x1x8xf32, #tpu.memory_space<vmem>>, vector<1x1x8xf32>,
    return
  }
  func.func @transform_0(%arg0: i32) -> (i32, i32) {
    %c0_i32 = arith.constant 0 : i32
    %c0_i32_0 = arith.constant 0 : i32
    return %arg0, %c0_i32 : i32, i32
  }
  func.func @transform_1(%arg0: i32) -> (i32, i32) {
    %c0_i32 = arith.constant 0 : i32
    %c0_i32_0 = arith.constant 0 : i32
    return %arg0, %c0_i32 : i32, i32
  }
  func.func @transform_2(%arg0: i32) -> (i32, i32) {
    %c0_i32 = arith.constant 0 : i32
    %c0_i32_0 = arith.constant 0 : i32
    %c0_i32_1 = arith.constant 0 : i32
    return %c0_i32, %c0_i32_0 : i32, i32
  }
  func.func @transform_3(%arg0: i32) -> (i32, i32) {
    %c0_i32 = arith.constant 0 : i32
    %c0_i32_0 = arith.constant 0 : i32
    %c0_i32_1 = arith.constant 0 : i32
    return %c0_i32, %c0_i32_0 : i32, i32
  }
  func.func @transform_4(%arg0: i32) -> (i32, i32) {
    %c0_i32 = arith.constant 0 : i32
    %c0_i32_0 = arith.constant 0 : i32
    %c0_i32_1 = arith.constant 0 : i32
    return %c0_i32, %c0_i32_0 : i32, i32
  }
  func.func @transform_5(%arg0: i32) -> (i32, i32) {
    %c0_i32 = arith.constant 0 : i32
    %c0_i32_0 = arith.constant 0 : i32
    %c0_i32_1 = arith.constant 0 : i32
    return %c0_i32, %c0_i32_0 : i32, i32
  }
  func.func @transform_6(%arg0: i32) -> (i32, i32) {
    %c0_i32 = arith.constant 0 : i32
    %c0_i32_0 = arith.constant 0 : i32
    %c0_i32_1 = arith.constant 0 : i32
    return %c0_i32, %c0_i32_0 : i32, i32
  }
  func.func @transform_7(%arg0: i32) -> (i32, i32) {
    %c0_i32 = arith.constant 0 : i32
    %c0_i32_0 = arith.constant 0 : i32
    %c0_i32_1 = arith.constant 0 : i32
    return %c0_i32, %c0_i32_0 : i32, i32
  }
  func.func @transform_8(%arg0: i32) -> (i32, i32) {
    %c0_i32 = arith.constant 0 : i32
    %c0_i32_0 = arith.constant 0 : i32
    %c0_i32_1 = arith.constant 0 : i32
    return %c0_i32, %c0_i32_0 : i32, i32
  }
  func.func @transform_9(%arg0: i32) -> (i32, i32, i32) {
    %c0_i32 = arith.constant 0 : i32
    %c0_i32_0 = arith.constant 0 : i32
    %c0_i32_1 = arith.constant 0 : i32
    return %arg0, %c0_i32, %c0_i32_0 : i32, i32, i32
  }
}

</mosaic_0001>

<llo_original>
// kernel: tpu_custom_call.1
$region0: #{tpu_custom_call.1}
  #allocation0 [shape = 'u32[]', space=smem, size = 0x4, offset = 0x4, fixed_abs, tag = 'smem constant byte address 0x4 - core index']
  #allocation1 [shape = 'u32[72,128]{1,0:T(1,128)}', space=vmem, size = 0x9000, scoped, tag = 'internal scratch']
  #allocation2 [shape = 'f32[1,1]{1,0:T(1,128)S(6)}', space=smem, size = 0x200, scoped, tag = 'scoped memory for tpu_custom_call.1']
  %s0 = inlined_call_operand.vmem [shape: f32[8,16], index: 0, kind: input, shape index: {}]
  %s1 = inlined_call_operand.vmem [shape: f32[8,8], index: 1, kind: input, shape index: {}]
  %s2 = inlined_call_operand.vmem [shape: f32[32,16], index: 2, kind: input, shape index: {}]
  %s3 = inlined_call_operand.vmem [shape: f32[32,8], index: 3, kind: input, shape index: {}]
  %s4 = inlined_call_operand.vmem [shape: f32[32,1], index: 4, kind: input, shape index: {}]
  %s5 = inlined_call_operand.vmem [shape: f32[32,32], index: 5, kind: input, shape index: {}]
  %s6 = inlined_call_operand.vmem [shape: f32[32,1], index: 6, kind: input, shape index: {}]
  %s7 = inlined_call_operand.vmem [shape: f32[1,32], index: 7, kind: input, shape index: {}]
  %s8 = inlined_call_operand.<no memory space> [shape: f32[1,1], index: 8, kind: input, shape index: {}]
  %s9 = inlined_call_operand.hbm [shape: f32[1,1,8], index: 9, kind: output, shape index: {}]
  %s10 = sld [smem:[#allocation0]]
  $region46: #{tpu_custom_call.1} parent=0
    _
  %s12 = ssub.s32 1, %s10
  %s13 = scalar_select 0, %s12, %s10
  %14 = sst [smem:[#allocation2]] %s8
  $region1: #{tpu_custom_call.1} parent=0
    #allocation3 [shape = 'u8[512]{0}', space=vmem, size = 0x400, scoped, tag = 'output window, operand 0, single buffered']
    #allocation4 [shape = 's32[1]{0}', space=sflag, size = 0x4, scoped, tag = 'scoped memory for tpu_custom_call.1']
    %15 = vsyncpa [#allocation4], 0
    // Predicated region
    $region2: #{tpu_custom_call.1} parent=1 // pred_check
      _
    $region3: #{tpu_custom_call.1} parent=1 // pred_check_branch
      %17 = sbr.rel (0) target = $region5
    $region4: #{tpu_custom_call.1} parent=1 // pred_region
      _
    $region5: #{tpu_custom_call.1} parent=1 // pred_fallthru
      _
    // Predicated region
    $region6: #{tpu_custom_call.1} parent=1 // pred_check
      _
    $region7: #{tpu_custom_call.1} parent=1 // pred_check_branch
      %19 = sbr.rel (0) target = $region9
    $region8: #{tpu_custom_call.1} parent=1 // pred_region
      _
    $region9: #{tpu_custom_call.1} parent=1 // pred_fallthru
      _
    // Predicated region
    $region10: #{tpu_custom_call.1} parent=1 // pred_check
      _
    $region11: #{tpu_custom_call.1} parent=1 // pred_check_branch
      %21 = sbr.rel (0) target = $region13
    $region12: #{tpu_custom_call.1} parent=1 // pred_region
      _
    $region13: #{tpu_custom_call.1} parent=1 // pred_fallthru
      _
    // Predicated region
    $region14: #{tpu_custom_call.1} parent=1 // pred_check
      _
    $region15: #{tpu_custom_call.1} parent=1 // pred_check_branch
      %23 = sbr.rel (0) target = $region17
    $region16: #{tpu_custom_call.1} parent=1 // pred_region
      _
    $region17: #{tpu_custom_call.1} parent=1 // pred_fallthru
      _
    // Predicated region
    $region18: #{tpu_custom_call.1} parent=1 // pred_check
      _
    $region19: #{tpu_custom_call.1} parent=1 // pred_check_branch
      %25 = sbr.rel (0) target = $region21
    $region20: #{tpu_custom_call.1} parent=1 // pred_region
      _
    $region21: #{tpu_custom_call.1} parent=1 // pred_fallthru
      _
    // Predicated region
    $region22: #{tpu_custom_call.1} parent=1 // pred_check
      _
    $region23: #{tpu_custom_call.1} parent=1 // pred_check_branch
      %27 = sbr.rel (0) target = $region25
    $region24: #{tpu_custom_call.1} parent=1 // pred_region
      _
    $region25: #{tpu_custom_call.1} parent=1 // pred_fallthru
      _
    // Predicated region
    $region26: #{tpu_custom_call.1} parent=1 // pred_check
      _
    $region27: #{tpu_custom_call.1} parent=1 // pred_check_branch
      %29 = sbr.rel (0) target = $region29
    $region28: #{tpu_custom_call.1} parent=1 // pred_region
      _
    $region29: #{tpu_custom_call.1} parent=1 // pred_fallthru
      _
    // Predicated region
    $region30: #{tpu_custom_call.1} parent=1 // pred_check
      _
    $region31: #{tpu_custom_call.1} parent=1 // pred_check_branch
      %31 = sbr.rel (0) target = $region33
    $region32: #{tpu_custom_call.1} parent=1 // pred_region
      _
    $region33: #{tpu_custom_call.1} parent=1 // pred_fallthru
      _
    // Predicated region
    $region34: #{tpu_custom_call.1} parent=1 // pred_check
      _
    $region35: #{tpu_custom_call.1} parent=1 // pred_check_branch
      %33 = sbr.rel (0) target = $region37
    $region36: #{tpu_custom_call.1} parent=1 // pred_region
      _
    $region37: #{tpu_custom_call.1} parent=1 // pred_fallthru
      _
    %v34 = vld [vmem:[%s0] sm:$0xff]
    %v35 = vld [vmem:[%s1] sm:$0xff]
    %v36 = vld [vmem:[%s2] sm:$0xff]
    %v37 = vld [vmem:[%s2 + $0x8] sm:$0xff]
    %v38 = vld [vmem:[%s2 + $0x10] sm:$0xff]
    %v39 = vld [vmem:[%s2 + $0x18] sm:$0xff]
    %v40 = vld [vmem:[%s3] sm:$0xff]
    %v41 = vld [vmem:[%s3 + $0x8] sm:$0xff]
    %v42 = vld [vmem:[%s3 + $0x10] sm:$0xff]
    %v43 = vld [vmem:[%s3 + $0x18] sm:$0xff]
    %vm44 = vcmask 64512
    %v46 = vsel %vm44, %v40, 0
    %v49 = vsel %vm44, %v41, 0
    %v52 = vsel %vm44, %v42, 0
    %v55 = vsel %vm44, %v43, 0
    %v58 = vsel %vm44, %v35, 0
    %60 = vmatpush.xpose.msra.mxu0 0.0
    %61 = vmatpush.xpose.msra.mxu0 0.0
    %62 = vmatpush.xpose.msra.mxu0 0.0
    %63 = vmatpush.xpose.msra.mxu0 0.0
    %64 = vmatpush.xpose.msra.mxu0 0.0
    %65 = vmatpush.xpose.msra.mxu0 0.0
    %66 = vmatpush.xpose.msra.mxu0 0.0
    %67 = vmatpush.xpose.msra.mxu0 0.0
    %68 = vmatpush.xpose.msra.mxu0 0.0
    %69 = vmatpush.xpose.msra.mxu0 0.0
    %70 = vmatpush.xpose.msra.mxu0 0.0
    %71 = vmatpush.xpose.msra.mxu0 0.0
    %72 = vmatpush.xpose.msra.mxu0 0.0
    %73 = vmatpush.xpose.msra.mxu0 0.0
    %74 = vmatpush.xpose.msra.mxu0 0.0
    %75 = vmatpush.xpose.msra.mxu0 %v58
    %76 = vmatmul.f32.gmra.mxu0 %v46
    %v77 = vpop.f32.mrf.mxu0
    %v78 = vadd.f32 0.0, %v77
    %79 = vmatmul.f32.gmra.mxu0 %v49
    %v80 = vpop.f32.mrf.mxu0
    %v81 = vadd.f32 0.0, %v80
    %82 = vmatmul.f32.gmra.mxu0 %v52
    %v83 = vpop.f32.mrf.mxu0
    %v84 = vadd.f32 0.0, %v83
    %85 = vmatmul.f32.gmra.mxu0 %v55
    %v86 = vpop.f32.mrf.mxu0
    %v87 = vadd.f32 0.0, %v86
    %88 = vdwg.mxu0
    %vm89 = vcmask 130048
    %v91 = vsel %vm89, %v36, 0
    %v94 = vsel %vm89, %v37, 0
    %v97 = vsel %vm89, %v38, 0
    %v100 = vsel %vm89, %v39, 0
    %v103 = vsel %vm89, %v34, 0
    %105 = vmatpush.xpose.msra.mxu0 0.0
    %106 = vmatpush.xpose.msra.mxu0 0.0
    %107 = vmatpush.xpose.msra.mxu0 0.0
    %108 = vmatpush.xpose.msra.mxu0 0.0
    %109 = vmatpush.xpose.msra.mxu0 0.0
    %110 = vmatpush.xpose.msra.mxu0 0.0
    %111 = vmatpush.xpose.msra.mxu0 0.0
    %112 = vmatpush.xpose.msra.mxu0 0.0
    %113 = vmatpush.xpose.msra.mxu0 0.0
    %114 = vmatpush.xpose.msra.mxu0 0.0
    %115 = vmatpush.xpose.msra.mxu0 0.0
    %116 = vmatpush.xpose.msra.mxu0 0.0
    %117 = vmatpush.xpose.msra.mxu0 0.0
    %118 = vmatpush.xpose.msra.mxu0 0.0
    %119 = vmatpush.xpose.msra.mxu0 0.0
    %120 = vmatpush.xpose.msra.mxu0 %v103
    %121 = vmatmul.f32.gmra.mxu0 %v91
    %v122 = vpop.f32.mrf.mxu0
    %v123 = vadd.f32 %v78, %v122
    %124 = vmatmul.f32.gmra.mxu0 %v94
    %v125 = vpop.f32.mrf.mxu0
    %v126 = vadd.f32 %v81, %v125
    %127 = vmatmul.f32.gmra.mxu0 %v97
    %v128 = vpop.f32.mrf.mxu0
    %v129 = vadd.f32 %v84, %v128
    %130 = vmatmul.f32.gmra.mxu0 %v100
    %v131 = vpop.f32.mrf.mxu0
    %v132 = vadd.f32 %v87, %v131
    %133 = vdwg.mxu0
    %v134 = vld [vmem:[%s4] sm:$0xff]
    %v135 = vld [vmem:[%s4 + $0x8] sm:$0xff]
    %v136 = vld [vmem:[%s4 + $0x10] sm:$0xff]
    %v137 = vld [vmem:[%s4 + $0x18] sm:$0xff]
    %139 = vset.pattern.permute.xlu0 0
    %140 = vperm.xlu0 %139, %v134
    %v141 = vpop.permute.xlu0 %140
    %144 = vset.pattern.permute.xlu0 0
    %145 = vperm.xlu0 %144, %v135
    %v146 = vpop.permute.xlu0 %145
    %149 = vset.pattern.permute.xlu0 0
    %150 = vperm.xlu0 %149, %v136
    %v151 = vpop.permute.xlu0 %150
    %154 = vset.pattern.permute.xlu0 0
    %155 = vperm.xlu0 %154, %v137
    %v156 = vpop.permute.xlu0 %155
    %v158 = vadd.f32 %v123, %v141
    %v159 = vadd.f32 %v126, %v146
    %v160 = vadd.f32 %v129, %v151
    %v161 = vadd.f32 %v132, %v156
    %v162 = vmax.f32 %v158, 0.0
    %v163 = vmax.f32 %v159, 0.0
    %v164 = vmax.f32 %v160, 0.0
    %v165 = vmax.f32 %v161, 0.0
    %v166 = vld [vmem:[%s5] sm:$0xff]
    %v167 = vld [vmem:[%s5 + $0x8] sm:$0xff]
    %v168 = vld [vmem:[%s5 + $0x10] sm:$0xff]
    %v169 = vld [vmem:[%s5 + $0x18] sm:$0xff]
    %v170 = vld [vmem:[%s6] sm:$0xff]
    %v171 = vld [vmem:[%s6 + $0x8] sm:$0xff]
    %v172 = vld [vmem:[%s6 + $0x10] sm:$0xff]
    %v173 = vld [vmem:[%s6 + $0x18] sm:$0xff]
    %175 = vset.pattern.permute.xlu0 0
    %176 = vperm.xlu0 %175, %v170
    %v177 = vpop.permute.xlu0 %176
    %180 = vset.pattern.permute.xlu0 0
    %181 = vperm.xlu0 %180, %v171
    %v182 = vpop.permute.xlu0 %181
    %185 = vset.pattern.permute.xlu0 0
    %186 = vperm.xlu0 %185, %v172
    %v187 = vpop.permute.xlu0 %186
    %190 = vset.pattern.permute.xlu0 0
    %191 = vperm.xlu0 %190, %v173
    %v192 = vpop.permute.xlu0 %191
    %vm194 = vcmask 261120
    %v196 = vsel %vm194, %v166, 0
    %v199 = vsel %vm194, %v167, 0
    %v202 = vsel %vm194, %v168, 0
    %v205 = vsel %vm194, %v169, 0
    %207 = vmatpush.msra.mxu0 0.0
    %208 = vmatpush.msra.mxu0 0.0
    %209 = vmatpush.msra.mxu0 0.0
    %210 = vmatpush.msra.mxu0 0.0
    %211 = vmatpush.msra.mxu0 0.0
    %212 = vmatpush.msra.mxu0 0.0
    %213 = vmatpush.msra.mxu0 0.0
    %214 = vmatpush.msra.mxu0 0.0
    %215 = vmatpush.msra.mxu0 0.0
    %216 = vmatpush.msra.mxu0 0.0
    %217 = vmatpush.msra.mxu0 0.0
    %218 = vmatpush.msra.mxu0 0.0
    %219 = vmatpush.msra.mxu0 %v165
    %220 = vmatpush.msra.mxu0 %v164
    %221 = vmatpush.msra.mxu0 %v163
    %222 = vmatpush.msra.mxu0 %v162
    %223 = vmatmul.f32.gmra.mxu0 %v196
    %v224 = vpop.f32.mrf.mxu0
    %v225 = vadd.f32 %v177, %v224
    %226 = vmatmul.f32.gmra.mxu0 %v199
    %v227 = vpop.f32.mrf.mxu0
    %v228 = vadd.f32 %v182, %v227
    %229 = vmatmul.f32.gmra.mxu0 %v202
    %v230 = vpop.f32.mrf.mxu0
    %v231 = vadd.f32 %v187, %v230
    %232 = vmatmul.f32.gmra.mxu0 %v205
    %v233 = vpop.f32.mrf.mxu0
    %v234 = vadd.f32 %v192, %v233
    %235 = vdwg.mxu0
    %v236 = vmax.f32 %v225, 0.0
    %v237 = vmax.f32 %v228, 0.0
    %v238 = vmax.f32 %v231, 0.0
    %v239 = vmax.f32 %v234, 0.0
    %v240 = vld [vmem:[%s7] sm:$0x1]
    %s241 = sld [smem:[#allocation2]]
    %v242 = vstv %s241
    %v244 = vsel %vm194, %v240, 0
    %246 = vmatpush.msra.mxu0 0.0
    %247 = vmatpush.msra.mxu0 0.0
    %248 = vmatpush.msra.mxu0 0.0
    %249 = vmatpush.msra.mxu0 0.0
    %250 = vmatpush.msra.mxu0 0.0
    %251 = vmatpush.msra.mxu0 0.0
    %252 = vmatpush.msra.mxu0 0.0
    %253 = vmatpush.msra.mxu0 0.0
    %254 = vmatpush.msra.mxu0 0.0
    %255 = vmatpush.msra.mxu0 0.0
    %256 = vmatpush.msra.mxu0 0.0
    %257 = vmatpush.msra.mxu0 0.0
    %258 = vmatpush.msra.mxu0 %v239
    %259 = vmatpush.msra.mxu0 %v238
    %260 = vmatpush.msra.mxu0 %v237
    %261 = vmatpush.msra.mxu0 %v236
    %262 = vmatmul.f32.gmra.mxu0 %v244
    %v263 = vpop.f32.mrf.mxu0
    %v264 = vadd.f32 %v242, %v263
    %265 = vdwg.mxu0
    %vm266 = vcmask 57344
    %267 = vst.msk [vmem:[#allocation3] sm:$0x1] %vm266, %v264
    // Predicated region
    $region38: #{tpu_custom_call.1} parent=1 // pred_check
      _
    $region39: #{tpu_custom_call.1} parent=1 // pred_check_branch
      %269 = sbr.rel (0) target = $region41
    $region40: #{tpu_custom_call.1} parent=1 // pred_region
      %271 = vsyncadd [#allocation4], 0
      %s273 = sshll.u32 [#allocation3], 4
      %s274 = int_to_ptr.vmem [resolvable:$true] %s273
      %s275 = sshll.u32 %s9, 4
      %s276 = int_to_ptr.hbm [resolvable:$true] %s275
      %278 = dma.vmem_to_hbm [thread:$0]  %s274, 16, %s276, [#allocation4]
    $region41: #{tpu_custom_call.1} parent=1 // pred_fallthru
      _
    // Predicated region
    $region42: #{tpu_custom_call.1} parent=1 // pred_check
      _
    $region43: #{tpu_custom_call.1} parent=1 // pred_check_branch
      %280 = sbr.rel (0) target = $region45
    $region44: #{tpu_custom_call.1} parent=1 // pred_region
      %282 = dma.done [#allocation4], 16
    $region45: #{tpu_custom_call.1} parent=1 // pred_fallthru
      _
    %283 = vsyncpa [#allocation4], 1

</llo_original>
